<compile_context>
chip_gen: v5e
topology: v5e:2x2
jax: 0.10.0
libtpu: 0.0.40
codegen_flags: <defaults>
</compile_context>

<pallas_src>
import functools

import jax
import jax.numpy as jnp
from jax.experimental import pallas as pl
from jax.experimental.pallas import tpu as pltpu


def _round_up(x, m):
    return (x + m - 1) // m * m


def _sublane_multiple(dtype):
    # 8 rows for 4-byte dtypes, 16 for 2-byte, 32 for 1-byte.
    return max(8, 32 // max(1, dtype.itemsize))


def _default_num_shards():
    # 2 TensorCores per chip on v4 / v5p / v7x; 1 on v5e / v6e.
    try:
        kind = jax.devices()[0].device_kind.lower()
    except Exception:
        return 1
    return 2 if any(t in kind for t in ("v7", "v4", "v5p")) else 1


def _actloc_mse_kernel(pred_ref, tgt_ref, out_ref, acc_ref, *,
                       blocks_per_shard, tile_rows, n_rows, full_blocks):
    s = pl.program_id(0)      # shard (parallel; split across TCs on 2-TC chips)
    j = pl.program_id(1)      # reduction step within the shard

    @pl.when(j == 0)
    def _init():
        acc_ref[...] = jnp.zeros_like(acc_ref)

    # Unclamped linear block id (the index_map clamps phantom blocks; masking
    # below uses the raw id so their contribution is exactly zero).
    lin = s * blocks_per_shard + j
    d = pred_ref[...].astype(jnp.float32) - tgt_ref[...].astype(jnp.float32)
    dd = d * d

    @pl.when(lin < full_blocks)
    def _interior():                       # fully valid block: no mask cost
        acc_ref[...] += dd

    @pl.when(lin >= full_blocks)
    def _edge():                           # partial tail block / phantom block
        row0 = lin * tile_rows
        rows = jax.lax.broadcasted_iota(jnp.int32, (tile_rows, 1), 0) + row0
        # NOTE: keep jnp.where (not mask*dd) so Pallas-padded garbage rows
        # (possibly NaN/Inf) never propagate.
        acc_ref[...] += jnp.where(rows < n_rows, dd, 0.0)

    @pl.when(j == pl.num_programs(1) - 1)
    def _finalize():
        out_ref[0, 0] = jnp.sum(acc_ref[...])


def act_loc_mse_loss(output, target, *, block_elems=1 << 20, num_shards=None):
    """Pallas implementation of ActLocMSELoss.forward."""
    B, T, C = target.shape
    if output.ndim == 2:
        # matches rearrange(output, 'b (t c) -> b t c', t=T, c=C)
        output = output.reshape(B, T, C)
    assert output.shape == target.shape

    n = B * T * C
    pred = output.reshape(-1)
    tgt = target.reshape(-1)

    # Lane-dense 2-D view (R, L).  Pick L so it divides n exactly -> zero-copy
    # reshape (no host-side pad, no extra HBM traffic).
    L = next((c for c in (512, 256, 128) if n % c == 0), None)
    n_eff = n
    if L is None:
        # TODO(synk): a truly copy-free path for n % 128 != 0 would need manual
        # 1-D DMA; fall back to a minimal zero pad (zeros add 0 to the SSD).
        L = 128
        pad = (-n) % L
        pred = jnp.pad(pred, (0, pad))
        tgt = jnp.pad(tgt, (0, pad))
        n_eff = n + pad
    R = n_eff // L
    pred2d = pred.reshape(R, L)
    tgt2d = tgt.reshape(R, L)

    sub = max(_sublane_multiple(output.dtype), _sublane_multiple(target.dtype))
    tr = max(sub, min(block_elems // L, _round_up(R, sub)))
    tr = _round_up(tr, sub)                        # legal packed tile rows

    nb = pl.cdiv(R, tr)                            # total row blocks
    full_blocks = R // tr                          # blocks with every row valid
    if num_shards is None:
        num_shards = _default_num_shards()
    shards = max(1, min(num_shards, nb))           # no more shards than blocks
    bps = pl.cdiv(nb, shards)                      # blocks/shard (imbalance <=1)

    kernel = functools.partial(
        _actloc_mse_kernel,
        blocks_per_shard=bps, tile_rows=tr, n_rows=R, full_blocks=full_blocks)

    def in_map(s, j):
        # Clamp so phantom steps re-read the last valid block; their
        # contribution is masked to zero inside the kernel.
        return (jnp.minimum(s * bps + j, nb - 1), 0)

    bytes_in = n * (output.dtype.itemsize + target.dtype.itemsize)

    partials = pl.pallas_call(
        kernel,
        out_shape=jax.ShapeDtypeStruct((shards, 1), jnp.float32),
        grid_spec=pltpu.PrefetchScalarGridSpec(
            num_scalar_prefetch=0,
            grid=(shards, bps),
            in_specs=[
                pl.BlockSpec((tr, L), in_map),
                pl.BlockSpec((tr, L), in_map),
            ],
            out_specs=pl.BlockSpec(
                (1, 1), lambda s, j: (s, 0),
                memory_space=pltpu.MemorySpace.SMEM,
            ),
            scratch_shapes=[pltpu.VMEM((tr, L), jnp.float32)],
        ),
        compiler_params=pltpu.CompilerParams(
            dimension_semantics=("parallel", "arbitrary"),
            vmem_limit_bytes=32 * 1024 * 1024,
        ),
        cost_estimate=pl.CostEstimate(
            flops=3 * n, transcendentals=0,
            bytes_accessed=bytes_in + shards * 4),
    )(pred2d, tgt2d)

    return 0.5 * jnp.sum(partials) / n


def _reference_loss(output, target):
    """Pure-JAX reference mirroring the PyTorch loop exactly."""
    B, T, C = target.shape
    if output.ndim == 2:
        output = output.reshape(B, T, C)
    pred = output.reshape(B, C, -1)
    gt = target.reshape(B, C, -1)
    loss = 0.0
    for idx in range(C):
        loss += 0.5 * jnp.mean((pred[:, idx, :] - gt[:, idx, :]) ** 2)
    return loss / C


if __name__ == "__main__":
    key = jax.random.PRNGKey(0)
    k1, k2, k3, k4, k5, k6 = jax.random.split(key, 6)

    # Small case: exercises the 2-D (b, t*c) input path of the module and the
    # padded fallback (n = 64 is not a multiple of 128).
    B, T, C = 2, 8, 4  # batch, num_frames, num_actions
    output = jax.random.normal(k1, (B, T * C), dtype=jnp.float32)
    target = jax.random.normal(k2, (B, T, C), dtype=jnp.float32)
    loss = jax.block_until_ready(act_loc_mse_loss(output, target))
    ref = _reference_loss(output, target)
    assert jnp.allclose(loss, ref, rtol=1e-5, atol=1e-6), (loss, ref)

    # Larger case: zero-copy lane-dense path (n % 512 == 0), one full block and
    # one partial tail block, auto shard count.
    B2, T2, C2 = 2, 65600, 8
    output2 = jax.random.normal(k3, (B2, T2, C2), dtype=jnp.float32)
    target2 = jax.random.normal(k4, (B2, T2, C2), dtype=jnp.float32)
    loss2 = jax.block_until_ready(act_loc_mse_loss(output2, target2))
    ref2 = _reference_loss(output2, target2)
    assert jnp.allclose(loss2, ref2, rtol=1e-4, atol=1e-6), (loss2, ref2)

    # Forced 2-shard case with a small block override: odd block count so one
    # shard runs a clamped phantom step (masked to zero) plus a partial tail.
    B3, T3, C3 = 2, 4160, 8          # n = 66560 = 130 * 512
    output3 = jax.random.normal(k5, (B3, T3, C3), dtype=jnp.float32)
    target3 = jax.random.normal(k6, (B3, T3, C3), dtype=jnp.float32)
    loss3 = jax.block_until_ready(
        act_loc_mse_loss(output3, target3, block_elems=64 * 512, num_shards=2))
    ref3 = _reference_loss(output3, target3)
    assert jnp.allclose(loss3, ref3, rtol=1e-4, atol=1e-6), (loss3, ref3)

    print("KERNEL_OK")
</pallas_src>

<mosaic_0001>
module attributes {stable_mosaic.version = 11 : i64} {
  func.func @_actloc_mse_kernel(%arg0: i32, %arg1: i32, %arg2: memref<8x128xf32, #tpu.memory_space<vmem>>, %arg3: memref<8x128xf32, #tpu.memory_space<vmem>>, %arg4: memref<1x1xf32, #tpu.memory_space<smem>>, %arg5: memref<8x128xf32, #tpu.memory_space<vmem>>) attributes {dimension_semantics = [#tpu.dimension_semantics<parallel>, #tpu.dimension_semantics<arbitrary>], iteration_bounds = array<i64: 1, 1>, scalar_prefetch = 0 : i64, scratch_operands = 1 : i64, tpu.core_type = #tpu.core_type<tc>, window_params = [{transform_indices = @transform_0, window_bounds = array<i64: 8, 128>}, {transform_indices = @transform_1, window_bounds = array<i64: 8, 128>}, {transform_indices = @transform_2, window_bounds = array<i64: 1, 1>}]} {
    %c0_i32 = arith.constant 0 : i32
    %0 = arith.cmpi eq, %arg1, %c0_i32 : i32
    %1 = arith.extui %0 : i1 to i32
    %c0_i32_0 = arith.constant 0 : i32
    %2 = arith.cmpi ne, %1, %c0_i32_0 : i32
    scf.if %2 {
      %cst = arith.constant 0.000000e+00 : f32
      %18 = vector.broadcast %cst : f32 to vector<8x128xf32>
      %c0_10 = arith.constant 0 : index
      %c0_11 = arith.constant 0 : index
      %19 = vector.load %arg5[%c0_10, %c0_11] : memref<8x128xf32, #tpu.memory_space<vmem>>, vector<8x128xf32>
      tpu.vector_store %arg5[%c0_10, %c0_11], %18 {strides = array<i32>} : memref<8x128xf32, #tpu.memory_space<vmem>>, vector<8x128xf32>,
    } else {
    }
    %c1_i32 = arith.constant 1 : i32
    %3 = arith.muli %arg0, %c1_i32 : i32
    %4 = arith.addi %3, %arg1 : i32
    %c0 = arith.constant 0 : index
    %c0_1 = arith.constant 0 : index
    %5 = vector.load %arg2[%c0, %c0_1] : memref<8x128xf32, #tpu.memory_space<vmem>>, vector<8x128xf32>
    %c0_2 = arith.constant 0 : index
    %c0_3 = arith.constant 0 : index
    %6 = vector.load %arg3[%c0_2, %c0_3] : memref<8x128xf32, #tpu.memory_space<vmem>>, vector<8x128xf32>
    %7 = arith.subf %5, %6 : vector<8x128xf32>
    %8 = arith.mulf %7, %7 : vector<8x128xf32>
    %c0_i32_4 = arith.constant 0 : i32
    %9 = arith.cmpi slt, %4, %c0_i32_4 : i32
    %10 = arith.extui %9 : i1 to i32
    %c0_i32_5 = arith.constant 0 : i32
    %11 = arith.cmpi ne, %10, %c0_i32_5 : i32
    scf.if %11 {
      %c0_10 = arith.constant 0 : index
      %c0_11 = arith.constant 0 : index
      %18 = vector.load %arg5[%c0_10, %c0_11] : memref<8x128xf32, #tpu.memory_space<vmem>>, vector<8x128xf32>
      %19 = arith.addf %18, %8 : vector<8x128xf32>
      %c0_12 = arith.constant 0 : index
      %c0_13 = arith.constant 0 : index
      %20 = vector.load %arg5[%c0_12, %c0_13] : memref<8x128xf32, #tpu.memory_space<vmem>>, vector<8x128xf32>
      tpu.vector_store %arg5[%c0_12, %c0_13], %19 {strides = array<i32>} : memref<8x128xf32, #tpu.memory_space<vmem>>, vector<8x128xf32>,
    } else {
    }
    %c0_i32_6 = arith.constant 0 : i32
    %12 = arith.cmpi sge, %4, %c0_i32_6 : i32
    %13 = arith.extui %12 : i1 to i32
    %c0_i32_7 = arith.constant 0 : i32
    %14 = arith.cmpi ne, %13, %c0_i32_7 : i32
    scf.if %14 {
      %c8_i32 = arith.constant 8 : i32
      %18 = arith.muli %4, %c8_i32 : i32
      %19 = tpu.iota {dimensions = array<i32: 0>} : vector<8x1xi32>
      %20 = vector.broadcast %18 : i32 to vector<8x1xi32>
      %21 = arith.addi %19, %20 : vector<8x1xi32>
      %c0_10 = arith.constant 0 : index
      %c0_11 = arith.constant 0 : index
      %22 = vector.load %arg5[%c0_10, %c0_11] : memref<8x128xf32, #tpu.memory_space<vmem>>, vector<8x128xf32>
      %c1_i32_12 = arith.constant 1 : i32
      %23 = vector.broadcast %c1_i32_12 : i32 to vector<8x1xi32>
      %24 = arith.cmpi slt, %21, %23 : vector<8x1xi32>
      %cst = arith.constant 0.000000e+00 : f32
      %25 = vector.shape_cast %24 : vector<8x1xi1> to vector<8x1xi1>
      %26 = vector.broadcast %25 : vector<8x1xi1> to vector<8x128xi1>
      %27 = vector.broadcast %cst : f32 to vector<8x128xf32>
      %28 = arith.select %26, %8, %27 : vector<8x128xi1>, vector<8x128xf32>
      %29 = arith.addf %22, %28 : vector<8x128xf32>
      %c0_13 = arith.constant 0 : index
      %c0_14 = arith.constant 0 : index
      %30 = vector.load %arg5[%c0_13, %c0_14] : memref<8x128xf32, #tpu.memory_space<vmem>>, vector<8x128xf32>
      tpu.vector_store %arg5[%c0_13, %c0_14], %29 {strides = array<i32>} : memref<8x128xf32, #tpu.memory_space<vmem>>, vector<8x128xf32>,
    } else {
    }
    %c0_i32_8 = arith.constant 0 : i32
    %15 = arith.cmpi eq, %arg1, %c0_i32_8 : i32
    %16 = arith.extui %15 : i1 to i32
    %c0_i32_9 = arith.constant 0 : i32
    %17 = arith.cmpi ne, %16, %c0_i32_9 : i32
    scf.if %17 {
      %c0_10 = arith.constant 0 : index
      %c0_11 = arith.constant 0 : index
      %18 = vector.load %arg5[%c0_10, %c0_11] : memref<8x128xf32, #tpu.memory_space<vmem>>, vector<8x128xf32>
      %19 = vector.shape_cast %18 : vector<8x128xf32> to vector<1x8x128xf32>
      %cst = arith.constant dense<0.000000e+00> : vector<1xf32>
      %20 = vector.multi_reduction <add>, %19, %cst [1, 2] : vector<1x8x128xf32> to vector<1xf32>
      %21 = vector.shape_cast %20 : vector<1xf32> to vector<1x1x1xf32>
      %22 = vector.extract %21[0, 0, 0] : f32 from vector<1x1x1xf32>
      %c0_12 = arith.constant 0 : index
      %c0_13 = arith.constant 0 : index
      %23 = memref.load %arg4[%c0_12, %c0_13] : memref<1x1xf32, #tpu.memory_space<smem>>
      memref.store %22, %arg4[%c0_12, %c0_13] : memref<1x1xf32, #tpu.memory_space<smem>>
    } else {
    }
    return
  }
  func.func @transform_0(%arg0: i32, %arg1: i32) -> (i32, i32) {
    %c1_i32 = arith.constant 1 : i32
    %0 = arith.muli %arg0, %c1_i32 : i32
    %1 = arith.addi %0, %arg1 : i32
    %c0_i32 = arith.constant 0 : i32
    %2 = arith.minsi %1, %c0_i32 : i32
    %c0_i32_0 = arith.constant 0 : i32
    %c0_i32_1 = arith.constant 0 : i32
    return %2, %c0_i32_0 : i32, i32
  }
  func.func @transform_1(%arg0: i32, %arg1: i32) -> (i32, i32) {
    %c1_i32 = arith.constant 1 : i32
    %0 = arith.muli %arg0, %c1_i32 : i32
    %1 = arith.addi %0, %arg1 : i32
    %c0_i32 = arith.constant 0 : i32
    %2 = arith.minsi %1, %c0_i32 : i32
    %c0_i32_0 = arith.constant 0 : i32
    %c0_i32_1 = arith.constant 0 : i32
    return %2, %c0_i32_0 : i32, i32
  }
  func.func @transform_2(%arg0: i32, %arg1: i32) -> (i32, i32) {
    %c0_i32 = arith.constant 0 : i32
    %c0_i32_0 = arith.constant 0 : i32
    return %arg0, %c0_i32 : i32, i32
  }
}

</mosaic_0001>

<llo_original>
// kernel: tpu_custom_call.1
$region0: #{tpu_custom_call.1}
  #allocation0 [shape = 'u32[]', space=smem, size = 0x4, offset = 0x4, fixed_abs, tag = 'smem constant byte address 0x4 - core index']
  #allocation1 [shape = 'u32[72,128]{1,0:T(1,128)}', space=vmem, size = 0x9000, scoped, tag = 'internal scratch']
  #allocation2 [shape = 'f32[8,128]{1,0:T(8,128)}', space=vmem, size = 0x1000, scoped, tag = 'scratch operand']
  %s0 = inlined_call_operand.hbm [shape: f32[1,128], index: 0, kind: input, shape index: {}]
  %s1 = inlined_call_operand.hbm [shape: f32[1,128], index: 1, kind: input, shape index: {}]
  %s2 = inlined_call_operand.hbm [shape: f32[1,1], index: 2, kind: output, shape index: {}]
  %s3 = sld [smem:[#allocation0]]
  $region42: #{tpu_custom_call.1} parent=0
    _
  %s5 = ssub.s32 1, %s3
  %s6 = scalar_select 0, %s5, %s3
  $region1: #{tpu_custom_call.1} parent=0
    #allocation3 [shape = 'u8[4096]{0}', space=vmem, size = 0x1000, scoped, tag = 'input window, operand 0, single buffered']
    #allocation4 [shape = 's32[1]{0}', space=sflag, size = 0x4, scoped, tag = 'scoped memory for tpu_custom_call.1']
    #allocation5 [shape = 's32[1]{0}', space=sflag, size = 0x4, scoped, tag = 'scoped memory for tpu_custom_call.1']
    #allocation6 [shape = 'u8[4096]{0}', space=vmem, size = 0x1000, scoped, tag = 'input window, operand 1, single buffered']
    #allocation7 [shape = 's32[1]{0}', space=sflag, size = 0x4, scoped, tag = 'scoped memory for tpu_custom_call.1']
    #allocation8 [shape = 'u8[512]{0}', space=smem, size = 0x200, scoped, tag = 'output window, operand 0, single buffered']
    %7 = vsyncpa [#allocation4], 0
    %8 = vsyncpa [#allocation7], 0
    %9 = vsyncpa [#allocation5], 0
    // Predicated region
    $region2: #{tpu_custom_call.1} parent=1 // pred_check
      _
    $region3: #{tpu_custom_call.1} parent=1 // pred_check_branch
      %11 = sbr.rel (0) target = $region5
    $region4: #{tpu_custom_call.1} parent=1 // pred_region
      %s12 = sadd.s32 0, 0
      %p13 = scmp.lt.s32.totalorder %s12, 0
      %s14 = scalar_select %p13, %s12, 0
      %s15 = smul.u32 8, %s14
      %s16 = ssub.s32 1, %s15
      %s17 = ssub.s32 8, %s16
      %s18 = sshll.u32 %s17, 4
      %19 = vsyncadd [#allocation4], %s18
      %p20 = scmp.ne.s32.totalorder 0, %s16
      %s21 = scalar_lea.hbm %s0, %s15
      %s22 = sshll.u32 %s21, 4
      %s23 = int_to_ptr.hbm [resolvable:$true] %s22
      %s24 = sshll.u32 [#allocation3], 4
      %s25 = int_to_ptr.vmem [resolvable:$true] %s24
      %s26 = sshll.u32 %s16, 4
      %30 = dma.hbm_to_vmem [thread:$0]  (%p20), %s23, %s26, %s25, [#allocation4], 16, 16, 1
    $region5: #{tpu_custom_call.1} parent=1 // pred_fallthru
      _
    // Predicated region
    $region6: #{tpu_custom_call.1} parent=1 // pred_check
      _
    $region7: #{tpu_custom_call.1} parent=1 // pred_check_branch
      %32 = sbr.rel (0) target = $region9
    $region8: #{tpu_custom_call.1} parent=1 // pred_region
      %s33 = sadd.s32 0, 0
      %p34 = scmp.lt.s32.totalorder %s33, 0
      %s35 = scalar_select %p34, %s33, 0
      %s36 = smul.u32 8, %s35
      %s37 = ssub.s32 1, %s36
      %s38 = ssub.s32 8, %s37
      %s39 = sshll.u32 %s38, 4
      %40 = vsyncadd [#allocation7], %s39
      %p41 = scmp.ne.s32.totalorder 0, %s37
      %s42 = scalar_lea.hbm %s1, %s36
      %s43 = sshll.u32 %s42, 4
      %s44 = int_to_ptr.hbm [resolvable:$true] %s43
      %s45 = sshll.u32 [#allocation6], 4
      %s46 = int_to_ptr.vmem [resolvable:$true] %s45
      %s47 = sshll.u32 %s37, 4
      %51 = dma.hbm_to_vmem [thread:$0]  (%p41), %s44, %s47, %s46, [#allocation7], 16, 16, 1
    $region9: #{tpu_custom_call.1} parent=1 // pred_fallthru
      _
    // Predicated region
    $region10: #{tpu_custom_call.1} parent=1 // pred_check
      _
    $region11: #{tpu_custom_call.1} parent=1 // pred_check_branch
      %53 = sbr.rel (0) target = $region13
    $region12: #{tpu_custom_call.1} parent=1 // pred_region
      %55 = dma.done [#allocation4], 128
    $region13: #{tpu_custom_call.1} parent=1 // pred_fallthru
      _
    // Predicated region
    $region14: #{tpu_custom_call.1} parent=1 // pred_check
      _
    $region15: #{tpu_custom_call.1} parent=1 // pred_check_branch
      %57 = sbr.rel (0) target = $region17
    $region16: #{tpu_custom_call.1} parent=1 // pred_region
      %59 = dma.done [#allocation7], 128
    $region17: #{tpu_custom_call.1} parent=1 // pred_fallthru
      _
    %s60 = sadd.s32 0, 0
    %p61 = scmp.lt.s32.totalorder %s60, 0
    %s62 = scalar_select %p61, %s60, 0
    %s63 = smul.u32 8, %s62
    %s64 = ssub.s32 1, %s63
    %s65 = sadd.s32 0, 0
    %p66 = scmp.lt.s32.totalorder %s65, 0
    %s67 = scalar_select %p66, %s65, 0
    %s68 = smul.u32 8, %s67
    %s69 = ssub.s32 1, %s68
    %p70 = scmp.eq.s32.totalorder 0, 0
    // Predicated region
    $region18: #{tpu_custom_call.1} parent=1 // pred_check
      %p71 = pneg %p70
    $region19: #{tpu_custom_call.1} parent=1 // pred_check_branch
      %73 = sbr.rel (%p71) target = $region21
    $region20: #{tpu_custom_call.1} parent=1 // pred_region
      %74 = vst [vmem:[#allocation2] sm:$0xff] 0.0
    $region21: #{tpu_custom_call.1} parent=1 // pred_fallthru
      _
    %s75 = sadd.s32 0, 0
    %v76 = vld [vmem:[#allocation3] sm:$0xff]
    %v77 = vld [vmem:[#allocation6] sm:$0xff]
    %v78 = vsub.f32 %v76, %v77
    %v79 = vmul.f32 %v78, %v78
    %p80 = scmp.lt.s32.totalorder %s75, 0
    // Predicated region
    $region22: #{tpu_custom_call.1} parent=1 // pred_check
      %p81 = pneg %p80
    $region23: #{tpu_custom_call.1} parent=1 // pred_check_branch
      %83 = sbr.rel (%p81) target = $region25
    $region24: #{tpu_custom_call.1} parent=1 // pred_region
      %v84 = vld [vmem:[#allocation2] sm:$0xff]
      %v85 = vadd.f32 %v84, %v79
      %86 = vst [vmem:[#allocation2] sm:$0xff] %v85
    $region25: #{tpu_custom_call.1} parent=1 // pred_fallthru
      _
    %p87 = scmp.ge.s32.totalorder %s75, 0
    // Predicated region
    $region26: #{tpu_custom_call.1} parent=1 // pred_check
      %p88 = pneg %p87
    $region27: #{tpu_custom_call.1} parent=1 // pred_check_branch
      %90 = sbr.rel (%p88) target = $region29
    $region28: #{tpu_custom_call.1} parent=1 // pred_region
      %s91 = smul.u32 %s75, 8
      %v92 = vlaneseq
      %v93 = vshrl.u32 %v92, 7
      %v94 = vstv %s91
      %v95 = vadd.s32 %v93, %v94
      %v96 = vld [vmem:[#allocation2] sm:$0xff]
      %vm97 = vcmp.lt.s32.totalorder %v95, 1
      %v98 = vsel %vm97, 1, 0
      %vm99 = vcmp.eq.s32.totalorder %v98, 1
      %v100 = vsel %vm99, %v79, 0.0
      %v101 = vadd.f32 %v96, %v100
      %102 = vst [vmem:[#allocation2] sm:$0xff] %v101
    $region29: #{tpu_custom_call.1} parent=1 // pred_fallthru
      _
    // Predicated region
    $region30: #{tpu_custom_call.1} parent=1 // pred_check
      %p103 = pneg %p70
    $region31: #{tpu_custom_call.1} parent=1 // pred_check_branch
      %105 = sbr.rel (%p103) target = $region33
    $region32: #{tpu_custom_call.1} parent=1 // pred_region
      %v106 = vld [vmem:[#allocation2] sm:$0xff]
      %107 = vadd.xlane.f32.xlu0 %v106
      %v108 = vpop.xlane.xlu0 %107
      %v109 = vrot.slane %v108, 4
      %v110 = vadd.f32 %v108, %v109
      %v111 = vrot.slane %v110, 2
      %v112 = vadd.f32 %v110, %v111
      %v113 = vrot.slane %v112, 1
      %v114 = vadd.f32 %v112, %v113
      %s115 = vtos %v114
      %s116 = scalar_lea.smem [#allocation8], 0
      %117 = sst [smem:[%s116]] %s115
    $region33: #{tpu_custom_call.1} parent=1 // pred_fallthru
      _
    // Predicated region
    $region34: #{tpu_custom_call.1} parent=1 // pred_check
      _
    $region35: #{tpu_custom_call.1} parent=1 // pred_check_branch
      %119 = sbr.rel (0) target = $region37
    $region36: #{tpu_custom_call.1} parent=1 // pred_region
      %121 = vsyncadd [#allocation5], 0
      %s123 = sshll.u32 %s2, 4
      %s124 = int_to_ptr.hbm [resolvable:$true] %s123
      %126 = dma.smem_to_hbm [#allocation8], 16, %s124, [#allocation5]
    $region37: #{tpu_custom_call.1} parent=1 // pred_fallthru
      _
    // Predicated region
    $region38: #{tpu_custom_call.1} parent=1 // pred_check
      _
    $region39: #{tpu_custom_call.1} parent=1 // pred_check_branch
      %128 = sbr.rel (0) target = $region41
    $region40: #{tpu_custom_call.1} parent=1 // pred_region
      %130 = dma.done [#allocation5], 16
    $region41: #{tpu_custom_call.1} parent=1 // pred_fallthru
      _
    %131 = sfence
    %132 = vsyncpa [#allocation4], 1
    %133 = vsyncpa [#allocation7], 1
    %134 = vsyncpa [#allocation5], 1

</llo_original>
